<compile_context>
chip_gen: v5e
topology: v5e:2x2
jax: 0.10.0
libtpu: 0.0.40
codegen_flags: <defaults>
</compile_context>

<pallas_src>
import functools

import jax
import jax.numpy as jnp
from jax import lax
from jax.experimental import pallas as pl
from jax.experimental.pallas import tpu as pltpu

BN_EPS = 1e-4
K = 3  # kernel_size (padding = K // 2 = 1, stride 1, dilation 1, groups 1)


def _conv_bn_relu_kernel(x_ref, w_ref, gath_ref, gath_t_ref, gamma_ref,
                         beta_ref, o_ref, *, n, h, w, cin, cout, kblock,
                         matmul_dtype):
    # x_ref:      (N, H, W*Cin)        lane-dense input slab (NHWC, (W,Cin) folded)
    # w_ref:      (K*kblock, W*Cout)   Toeplitz im2col weight matrix (matmul_dtype)
    # gath_ref:   (W*Cout, Cout)       0/1 selector: packed lane -> channel
    # gath_t_ref: (Cout, W*Cout)       its transpose: channel -> packed lanes
    # gamma_ref:  (1, Cout)
    # beta_ref:   (1, Cout)
    # o_ref:      (N*H, W*Cout)        lane-dense packed output
    nh = n * h
    wcin = w * cin
    m_total = n * h * w  # samples per channel for the batch statistics

    # ---- row-wise im2col built directly in vregs -----------------------------
    # Tap kh reads input row (r + kh - 1): realized as sublane rotations of the
    # flattened (N*H, W*Cin) slab; cross-batch / halo rows are masked to zero
    # with a cheap iota compare.  The 'same' padding along W is folded into the
    # Toeplitz RHS (zero weight rows), so no column masking is needed here.
    x_flat = x_ref[...].reshape(nh, wcin)                      # fold (N, H) -> rows
    row = lax.broadcasted_iota(jnp.int32, (nh, wcin), 0)
    up = jnp.where(row % h == 0, 0.0,
                   pltpu.roll(x_flat, shift=1, axis=0))        # row r <- x[r-1]
    dn = jnp.where(row % h == h - 1, 0.0,
                   pltpu.roll(x_flat, shift=nh - 1, axis=0))   # row r <- x[r+1]

    pad_cols = kblock - wcin
    pieces = []
    for slab in (up, x_flat, dn):                              # kh = 0, 1, 2
        pieces.append(slab.astype(matmul_dtype))
        if pad_cols:                                           # keep RHS row-aligned
            pieces.append(jnp.zeros((nh, pad_cols), matmul_dtype))
    lhs = jnp.concatenate(pieces, axis=1)                      # (N*H, K*kblock)

    # ---- convolution: ONE deep MXU matmul, f32 accumulation ------------------
    acc = jnp.dot(lhs, w_ref[...],
                  preferred_element_type=jnp.float32)          # (N*H, W*Cout)

    # ---- BatchNorm (training-mode) statistics: single pass, on the MXU -------
    ones = jnp.ones((1, nh), jnp.float32)
    s1_wc = jnp.dot(ones, acc, preferred_element_type=jnp.float32)        # (1, W*Cout)
    s2_wc = jnp.dot(ones, acc * acc, preferred_element_type=jnp.float32)  # (1, W*Cout)
    s1 = jnp.dot(s1_wc, gath_ref[...], preferred_element_type=jnp.float32)  # (1, Cout)
    s2 = jnp.dot(s2_wc, gath_ref[...], preferred_element_type=jnp.float32)  # (1, Cout)

    inv_m = 1.0 / float(m_total)
    mean = s1 * inv_m
    # Clamp: E[x^2] - E[x]^2 can cancel slightly negative for large-mean channels.
    var = jnp.maximum(s2 * inv_m - mean * mean, 0.0)
    inv_std = lax.rsqrt(var + BN_EPS)
    scale_c = gamma_ref[...] * inv_std                                    # (1, Cout)
    shift_c = beta_ref[...] - mean * scale_c                              # (1, Cout)

    # ---- broadcast per-channel (scale, shift) to packed (w, c) lanes ---------
    # One stacked (2, Cout) x (Cout, W*Cout) MXU matmul against the transposed
    # selector built wrapper-side (no in-kernel selector rebuild, no implicit
    # transpose).
    ss = jnp.concatenate([scale_c, shift_c], axis=0)                      # (2, Cout)
    ss_l = jnp.dot(ss, gath_t_ref[...],
                   preferred_element_type=jnp.float32)                    # (2, W*Cout)

    # ---- BN apply + ReLU on the lane-dense packed view, unmasked store -------
    o_ref[...] = jnp.maximum(acc * ss_l[0:1, :] + ss_l[1:2, :],
                             0.0).astype(o_ref.dtype)


def _build_conv_matrix(w_oihw, width, kblock):
    """(Cout, Cin, K, K) -> (K*kblock, W*Cout) Toeplitz im2col weight matrix.

    Row index = kh*kblock + cx*Cin + ci  (cx = input column; 'same' padding in
    W is encoded as zero rows where kw = cx - w + K//2 falls outside [0, K)).
    Col index = w*Cout + co  (matches the kernel's lane-dense packed output).
    Weight preprocessing only; runs once per call in plain XLA.
    """
    cout, cin, ksize, _ = w_oihw.shape
    w_hwio = jnp.transpose(w_oihw, (2, 3, 1, 0)).astype(jnp.float32)  # (K, K, Cin, Cout)
    cx = jnp.arange(width)[None, :, None]          # input column
    wo = jnp.arange(width)[None, None, :]          # output column
    kw = jnp.arange(ksize)[:, None, None]          # tap
    mask = (cx == wo + kw - (ksize // 2)).astype(jnp.float32)         # (K, W, W)
    t = jnp.einsum("kxw,hkio->hxiwo", mask, w_hwio)                   # (K, W, Cin, W, Cout)
    t = t.reshape(ksize, width * cin, width * cout)
    if kblock > width * cin:
        t = jnp.pad(t, ((0, 0), (0, kblock - width * cin), (0, 0)))
    return t.reshape(ksize * kblock, width * cout)


def conv_bn_relu(x_nchw, w_oihw, gamma, beta, *, matmul_dtype=jnp.float32):
    """x_nchw: (N, Cin, H, W); w_oihw: (Cout, Cin, K, K); gamma/beta: (Cout,).

    matmul_dtype: keep f32 here (toy shapes, tight tolerance); set jnp.bfloat16
    on v5e/v6e/v7x at realistic channel counts (accumulation stays f32).
    """
    N, Cin, H, W = x_nchw.shape
    Cout = w_oihw.shape[0]
    assert w_oihw.shape[2] == K and w_oihw.shape[3] == K
    wcin = W * Cin
    kblock = ((wcin + 127) // 128) * 128  # lane-tile-aligned im2col block stride

    # Boundary layout glue only (padding and im2col both live inside the kernel).
    x_slab = (jnp.transpose(x_nchw, (0, 2, 3, 1))
              .reshape(N, H, wcin).astype(jnp.float32))
    rhs = _build_conv_matrix(w_oihw, W, kblock).astype(matmul_dtype)
    eye = jnp.eye(Cout, dtype=jnp.float32)
    gath = jnp.tile(eye, (W, 1))                 # (W*Cout, Cout)
    gath_t = jnp.tile(eye, (1, W))               # (Cout, W*Cout)
    gamma2 = gamma.reshape(1, Cout).astype(jnp.float32)
    beta2 = beta.reshape(1, Cout).astype(jnp.float32)

    kernel = functools.partial(
        _conv_bn_relu_kernel, n=N, h=H, w=W, cin=Cin, cout=Cout,
        kblock=kblock, matmul_dtype=matmul_dtype)

    out_packed = pl.pallas_call(
        kernel,
        out_shape=jax.ShapeDtypeStruct((N * H, W * Cout), jnp.float32),
        grid=(1,),
        in_specs=[
            pl.BlockSpec((N, H, wcin), lambda i: (0, 0, 0)),
            pl.BlockSpec((K * kblock, W * Cout), lambda i: (0, 0)),
            pl.BlockSpec((W * Cout, Cout), lambda i: (0, 0)),
            pl.BlockSpec((Cout, W * Cout), lambda i: (0, 0)),
            pl.BlockSpec((1, Cout), lambda i: (0, 0)),
            pl.BlockSpec((1, Cout), lambda i: (0, 0)),
        ],
        out_specs=pl.BlockSpec((N * H, W * Cout), lambda i: (0, 0)),
        compiler_params=pltpu.CompilerParams(
            dimension_semantics=("arbitrary",)),
    )(x_slab, rhs, gath, gath_t, gamma2, beta2)

    out_nhwc = out_packed.reshape(N, H, W, Cout)
    return jnp.transpose(out_nhwc, (0, 3, 1, 2))  # back to NCHW


def reference(x_nchw, w_oihw, gamma, beta):
    """Pure-JAX reference (matches PyTorch ConvBnRelu2d forward in train mode)."""
    y = lax.conv_general_dilated(
        x_nchw, w_oihw, window_strides=(1, 1), padding=((1, 1), (1, 1)),
        dimension_numbers=("NCHW", "OIHW", "NCHW"))
    mean = jnp.mean(y, axis=(0, 2, 3), keepdims=True)
    var = jnp.mean((y - mean) ** 2, axis=(0, 2, 3), keepdims=True)
    y = (y - mean) / jnp.sqrt(var + BN_EPS)
    y = y * gamma.reshape(1, -1, 1, 1) + beta.reshape(1, -1, 1, 1)
    return jnp.maximum(y, 0.0)


if __name__ == "__main__":
    key = jax.random.PRNGKey(0)
    kx, kw_, kg, kb = jax.random.split(key, 4)

    N, Cin, H, W, Cout = 2, 8, 16, 16, 16
    x = jax.random.normal(kx, (N, Cin, H, W), jnp.float32)
    # Deterministic synthetic parameters (Conv2d has no bias in this module).
    w = 0.1 * jax.random.normal(kw_, (Cout, Cin, K, K), jnp.float32)
    gamma = 1.0 + 0.1 * jax.random.normal(kg, (Cout,), jnp.float32)
    beta = 0.1 * jax.random.normal(kb, (Cout,), jnp.float32)

    out = conv_bn_relu(x, w, gamma, beta)
    out = jax.block_until_ready(out)

    ref = reference(x, w, gamma, beta)
    assert out.shape == (N, Cout, H, W), out.shape
    max_err = float(jnp.max(jnp.abs(out - ref)))
    assert max_err < 2e-4, max_err

    print("KERNEL_OK")
</pallas_src>

<mosaic_0001>
module attributes {stable_mosaic.version = 11 : i64} {
  func.func @_conv_bn_relu_kernel(%arg0: i32, %arg1: memref<2x16x128xf32, #tpu.memory_space<vmem>>, %arg2: memref<384x256xf32, #tpu.memory_space<vmem>>, %arg3: memref<256x16xf32, #tpu.memory_space<vmem>>, %arg4: memref<16x256xf32, #tpu.memory_space<vmem>>, %arg5: memref<1x16xf32, #tpu.memory_space<vmem>>, %arg6: memref<1x16xf32, #tpu.memory_space<vmem>>, %arg7: memref<32x256xf32, #tpu.memory_space<vmem>>) attributes {dimension_semantics = [#tpu.dimension_semantics<arbitrary>], iteration_bounds = array<i64: 1>, scalar_prefetch = 0 : i64, scratch_operands = 0 : i64, tpu.core_type = #tpu.core_type<tc>, window_params = [{pipeline_mode = #tpu.pipeline_mode<synchronous>, transform_indices = @transform_0, window_bounds = array<i64: 2, 16, 128>}, {pipeline_mode = #tpu.pipeline_mode<synchronous>, transform_indices = @transform_1, window_bounds = array<i64: 384, 256>}, {pipeline_mode = #tpu.pipeline_mode<synchronous>, transform_indices = @transform_2, window_bounds = array<i64: 256, 16>}, {pipeline_mode = #tpu.pipeline_mode<synchronous>, transform_indices = @transform_3, window_bounds = array<i64: 16, 256>}, {pipeline_mode = #tpu.pipeline_mode<synchronous>, transform_indices = @transform_4, window_bounds = array<i64: 1, 16>}, {pipeline_mode = #tpu.pipeline_mode<synchronous>, transform_indices = @transform_5, window_bounds = array<i64: 1, 16>}, {pipeline_mode = #tpu.pipeline_mode<synchronous>, transform_indices = @transform_6, window_bounds = array<i64: 32, 256>}]} {
    %c0 = arith.constant 0 : index
    %c0_0 = arith.constant 0 : index
    %c0_1 = arith.constant 0 : index
    %0 = vector.load %arg1[%c0, %c0_0, %c0_1] : memref<2x16x128xf32, #tpu.memory_space<vmem>>, vector<2x16x128xf32>
    %1 = vector.shape_cast %0 : vector<2x16x128xf32> to vector<32x128xf32>
    %2 = tpu.iota {dimensions = array<i32: 0>} : vector<32x128xi32>
    %c16_i32 = arith.constant 16 : i32
    %c0_i32 = arith.constant 0 : i32
    %3 = arith.cmpi eq, %c16_i32, %c0_i32 : i32
    %c1_i32 = arith.constant 1 : i32
    %4 = arith.select %3, %c1_i32, %c16_i32 : i32
    %5 = vector.broadcast %4 : i32 to vector<32x128xi32>
    %6 = arith.remsi %2, %5 : vector<32x128xi32>
    %c0_i32_2 = arith.constant 0 : i32
    %7 = vector.broadcast %c0_i32_2 : i32 to vector<32x128xi32>
    %8 = arith.cmpi ne, %6, %7 : vector<32x128xi32>
    %c0_i32_3 = arith.constant 0 : i32
    %9 = vector.broadcast %c0_i32_3 : i32 to vector<32x128xi32>
    %10 = arith.cmpi slt, %6, %9 : vector<32x128xi32>
    %c0_i32_4 = arith.constant 0 : i32
    %11 = arith.cmpi slt, %4, %c0_i32_4 : i32
    %12 = vector.broadcast %11 : i1 to vector<32x128xi1>
    %13 = vector.broadcast %12 : vector<32x128xi1> to vector<32x128xi1>
    %14 = arith.xori %10, %13 : vector<32x128xi1>
    %15 = arith.andi %14, %8 : vector<32x128xi1>
    %16 = vector.broadcast %4 : i32 to vector<32x128xi32>
    %17 = arith.addi %6, %16 : vector<32x128xi32>
    %18 = arith.select %15, %17, %6 : vector<32x128xi1>, vector<32x128xi32>
    %c0_i32_5 = arith.constant 0 : i32
    %19 = vector.broadcast %c0_i32_5 : i32 to vector<32x128xi32>
    %20 = arith.cmpi eq, %18, %19 : vector<32x128xi32>
    %c1_i32_6 = arith.constant 1 : i32
    %21 = tpu.dynamic_rotate %1 by %c1_i32_6 dim 0 : vector<32x128xf32>, i32 -> vector<32x128xf32>
    %cst = arith.constant 0.000000e+00 : f32
    %22 = vector.broadcast %cst : f32 to vector<32x128xf32>
    %23 = arith.select %20, %22, %21 : vector<32x128xi1>, vector<32x128xf32>
    %c16_i32_7 = arith.constant 16 : i32
    %c0_i32_8 = arith.constant 0 : i32
    %24 = arith.cmpi eq, %c16_i32_7, %c0_i32_8 : i32
    %c1_i32_9 = arith.constant 1 : i32
    %25 = arith.select %24, %c1_i32_9, %c16_i32_7 : i32
    %26 = vector.broadcast %25 : i32 to vector<32x128xi32>
    %27 = arith.remsi %2, %26 : vector<32x128xi32>
    %c0_i32_10 = arith.constant 0 : i32
    %28 = vector.broadcast %c0_i32_10 : i32 to vector<32x128xi32>
    %29 = arith.cmpi ne, %27, %28 : vector<32x128xi32>
    %c0_i32_11 = arith.constant 0 : i32
    %30 = vector.broadcast %c0_i32_11 : i32 to vector<32x128xi32>
    %31 = arith.cmpi slt, %27, %30 : vector<32x128xi32>
    %c0_i32_12 = arith.constant 0 : i32
    %32 = arith.cmpi slt, %25, %c0_i32_12 : i32
    %33 = vector.broadcast %32 : i1 to vector<32x128xi1>
    %34 = vector.broadcast %33 : vector<32x128xi1> to vector<32x128xi1>
    %35 = arith.xori %31, %34 : vector<32x128xi1>
    %36 = arith.andi %35, %29 : vector<32x128xi1>
    %37 = vector.broadcast %25 : i32 to vector<32x128xi32>
    %38 = arith.addi %27, %37 : vector<32x128xi32>
    %39 = arith.select %36, %38, %27 : vector<32x128xi1>, vector<32x128xi32>
    %c15_i32 = arith.constant 15 : i32
    %40 = vector.broadcast %c15_i32 : i32 to vector<32x128xi32>
    %41 = arith.cmpi eq, %39, %40 : vector<32x128xi32>
    %c31_i32 = arith.constant 31 : i32
    %42 = tpu.dynamic_rotate %1 by %c31_i32 dim 0 : vector<32x128xf32>, i32 -> vector<32x128xf32>
    %cst_13 = arith.constant 0.000000e+00 : f32
    %43 = vector.broadcast %cst_13 : f32 to vector<32x128xf32>
    %44 = arith.select %41, %43, %42 : vector<32x128xi1>, vector<32x128xf32>
    %45 = tpu.concatenate %23, %1, %44 in 1 : vector<32x128xf32>, vector<32x128xf32>, vector<32x128xf32> -> vector<32x384xf32>
    %c0_14 = arith.constant 0 : index
    %c0_15 = arith.constant 0 : index
    %46 = vector.load %arg2[%c0_14, %c0_15] : memref<384x256xf32, #tpu.memory_space<vmem>>, vector<384x256xf32>
    %cst_16 = arith.constant dense<0.000000e+00> : vector<32x256xf32>
    %47 = tpu.matmul %45, %46, %cst_16 {dimension_numbers = #tpu.dot_dimension_numbers<[1], [0], [0], [1], [0, 0, 1, 1], [], []>} : vector<32x384xf32>, vector<384x256xf32>, vector<32x256xf32> -> vector<32x256xf32>
    %cst_17 = arith.constant 1.000000e+00 : f32
    %48 = vector.broadcast %cst_17 : f32 to vector<1x32xf32>
    %cst_18 = arith.constant dense<0.000000e+00> : vector<1x256xf32>
    %49 = tpu.matmul %48, %47, %cst_18 {dimension_numbers = #tpu.dot_dimension_numbers<[1], [0], [0], [1], [0, 0, 1, 1], [], []>} : vector<1x32xf32>, vector<32x256xf32>, vector<1x256xf32> -> vector<1x256xf32>
    %50 = arith.mulf %47, %47 : vector<32x256xf32>
    %cst_19 = arith.constant dense<0.000000e+00> : vector<1x256xf32>
    %51 = tpu.matmul %48, %50, %cst_19 {dimension_numbers = #tpu.dot_dimension_numbers<[1], [0], [0], [1], [0, 0, 1, 1], [], []>} : vector<1x32xf32>, vector<32x256xf32>, vector<1x256xf32> -> vector<1x256xf32>
    %c0_20 = arith.constant 0 : index
    %c0_21 = arith.constant 0 : index
    %52 = vector.load %arg3[%c0_20, %c0_21] : memref<256x16xf32, #tpu.memory_space<vmem>>, vector<256x16xf32>
    %cst_22 = arith.constant dense<0.000000e+00> : vector<1x16xf32>
    %53 = tpu.matmul %49, %52, %cst_22 {dimension_numbers = #tpu.dot_dimension_numbers<[1], [0], [0], [1], [0, 0, 1, 1], [], []>} : vector<1x256xf32>, vector<256x16xf32>, vector<1x16xf32> -> vector<1x16xf32>
    %c0_23 = arith.constant 0 : index
    %c0_24 = arith.constant 0 : index
    %54 = vector.load %arg3[%c0_23, %c0_24] : memref<256x16xf32, #tpu.memory_space<vmem>>, vector<256x16xf32>
    %cst_25 = arith.constant dense<0.000000e+00> : vector<1x16xf32>
    %55 = tpu.matmul %51, %54, %cst_25 {dimension_numbers = #tpu.dot_dimension_numbers<[1], [0], [0], [1], [0, 0, 1, 1], [], []>} : vector<1x256xf32>, vector<256x16xf32>, vector<1x16xf32> -> vector<1x16xf32>
    %cst_26 = arith.constant 0.001953125 : f32
    %56 = vector.broadcast %cst_26 : f32 to vector<1x16xf32>
    %57 = arith.mulf %53, %56 : vector<1x16xf32>
    %cst_27 = arith.constant 0.001953125 : f32
    %58 = vector.broadcast %cst_27 : f32 to vector<1x16xf32>
    %59 = arith.mulf %55, %58 : vector<1x16xf32>
    %60 = arith.mulf %57, %57 : vector<1x16xf32>
    %61 = arith.subf %59, %60 : vector<1x16xf32>
    %cst_28 = arith.constant 0.000000e+00 : f32
    %62 = vector.broadcast %cst_28 : f32 to vector<1x16xf32>
    %63 = arith.maximumf %61, %62 : vector<1x16xf32>
    %cst_29 = arith.constant 9.99999974E-5 : f32
    %64 = vector.broadcast %cst_29 : f32 to vector<1x16xf32>
    %65 = arith.addf %63, %64 : vector<1x16xf32>
    %66 = math.rsqrt %65 : vector<1x16xf32>
    %c0_30 = arith.constant 0 : index
    %c0_31 = arith.constant 0 : index
    %67 = vector.load %arg5[%c0_30, %c0_31] : memref<1x16xf32, #tpu.memory_space<vmem>>, vector<1x16xf32>
    %68 = arith.mulf %67, %66 : vector<1x16xf32>
    %c0_32 = arith.constant 0 : index
    %c0_33 = arith.constant 0 : index
    %69 = vector.load %arg6[%c0_32, %c0_33] : memref<1x16xf32, #tpu.memory_space<vmem>>, vector<1x16xf32>
    %70 = arith.mulf %57, %68 : vector<1x16xf32>
    %71 = arith.subf %69, %70 : vector<1x16xf32>
    %72 = tpu.concatenate %68, %71 in 0 : vector<1x16xf32>, vector<1x16xf32> -> vector<2x16xf32>
    %c0_34 = arith.constant 0 : index
    %c0_35 = arith.constant 0 : index
    %73 = vector.load %arg4[%c0_34, %c0_35] : memref<16x256xf32, #tpu.memory_space<vmem>>, vector<16x256xf32>
    %cst_36 = arith.constant dense<0.000000e+00> : vector<2x256xf32>
    %74 = tpu.matmul %72, %73, %cst_36 {dimension_numbers = #tpu.dot_dimension_numbers<[1], [0], [0], [1], [0, 0, 1, 1], [], []>} : vector<2x16xf32>, vector<16x256xf32>, vector<2x256xf32> -> vector<2x256xf32>
    %75 = vector.extract_strided_slice %74 {offsets = [0, 0], sizes = [1, 256], strides = [1, 1]} : vector<2x256xf32> to vector<1x256xf32>
    %76 = vector.broadcast %75 : vector<1x256xf32> to vector<32x256xf32>
    %77 = arith.mulf %47, %76 : vector<32x256xf32>
    %78 = vector.extract_strided_slice %74 {offsets = [1, 0], sizes = [1, 256], strides = [1, 1]} : vector<2x256xf32> to vector<1x256xf32>
    %79 = vector.broadcast %78 : vector<1x256xf32> to vector<32x256xf32>
    %80 = arith.addf %77, %79 : vector<32x256xf32>
    %cst_37 = arith.constant 0.000000e+00 : f32
    %81 = vector.broadcast %cst_37 : f32 to vector<32x256xf32>
    %82 = arith.maximumf %80, %81 : vector<32x256xf32>
    %c0_38 = arith.constant 0 : index
    %c0_39 = arith.constant 0 : index
    %83 = vector.load %arg7[%c0_38, %c0_39] : memref<32x256xf32, #tpu.memory_space<vmem>>, vector<32x256xf32>
    tpu.vector_store %arg7[%c0_38, %c0_39], %82 {strides = array<i32>} : memref<32x256xf32, #tpu.memory_space<vmem>>, vector<32x256xf32>,
    return
  }
  func.func @transform_0(%arg0: i32) -> (i32, i32, i32) {
    %c0_i32 = arith.constant 0 : i32
    %c0_i32_0 = arith.constant 0 : i32
    %c0_i32_1 = arith.constant 0 : i32
    %c0_i32_2 = arith.constant 0 : i32
    return %c0_i32, %c0_i32_0, %c0_i32_1 : i32, i32, i32
  }
  func.func @transform_1(%arg0: i32) -> (i32, i32) {
    %c0_i32 = arith.constant 0 : i32
    %c0_i32_0 = arith.constant 0 : i32
    %c0_i32_1 = arith.constant 0 : i32
    return %c0_i32, %c0_i32_0 : i32, i32
  }
  func.func @transform_2(%arg0: i32) -> (i32, i32) {
    %c0_i32 = arith.constant 0 : i32
    %c0_i32_0 = arith.constant 0 : i32
    %c0_i32_1 = arith.constant 0 : i32
    return %c0_i32, %c0_i32_0 : i32, i32
  }
  func.func @transform_3(%arg0: i32) -> (i32, i32) {
    %c0_i32 = arith.constant 0 : i32
    %c0_i32_0 = arith.constant 0 : i32
    %c0_i32_1 = arith.constant 0 : i32
    return %c0_i32, %c0_i32_0 : i32, i32
  }
  func.func @transform_4(%arg0: i32) -> (i32, i32) {
    %c0_i32 = arith.constant 0 : i32
    %c0_i32_0 = arith.constant 0 : i32
    %c0_i32_1 = arith.constant 0 : i32
    return %c0_i32, %c0_i32_0 : i32, i32
  }
  func.func @transform_5(%arg0: i32) -> (i32, i32) {
    %c0_i32 = arith.constant 0 : i32
    %c0_i32_0 = arith.constant 0 : i32
    %c0_i32_1 = arith.constant 0 : i32
    return %c0_i32, %c0_i32_0 : i32, i32
  }
  func.func @transform_6(%arg0: i32) -> (i32, i32) {
    %c0_i32 = arith.constant 0 : i32
    %c0_i32_0 = arith.constant 0 : i32
    %c0_i32_1 = arith.constant 0 : i32
    return %c0_i32, %c0_i32_0 : i32, i32
  }
}

</mosaic_0001>

<llo_original>
// kernel: tpu_custom_call.1
$region0: #{tpu_custom_call.1}
  #allocation0 [shape = 'u32[]', space=smem, size = 0x4, offset = 0x4, fixed_abs, tag = 'smem constant byte address 0x4 - core index']
  #allocation1 [shape = 'u32[72,128]{1,0:T(1,128)}', space=vmem, size = 0x9000, scoped, tag = 'internal scratch']
  %s0 = inlined_call_operand.vmem [shape: f32[2,16,128], index: 0, kind: input, shape index: {}]
  %s1 = inlined_call_operand.hbm [shape: f32[384,256], index: 1, kind: input, shape index: {}]
  %s2 = inlined_call_operand.vmem [shape: f32[256,16], index: 2, kind: input, shape index: {}]
  %s3 = inlined_call_operand.vmem [shape: f32[16,256], index: 3, kind: input, shape index: {}]
  %s4 = inlined_call_operand.vmem [shape: f32[1,16], index: 4, kind: input, shape index: {}]
  %s5 = inlined_call_operand.vmem [shape: f32[1,16], index: 5, kind: input, shape index: {}]
  %s6 = inlined_call_operand.hbm [shape: f32[32,256], index: 6, kind: output, shape index: {}]
  %s7 = sld [smem:[#allocation0]]
  $region38: #{tpu_custom_call.1} parent=0
    _
  %s9 = ssub.s32 1, %s7
  %s10 = scalar_select 0, %s9, %s7
  $region1: #{tpu_custom_call.1} parent=0
    #allocation2 [shape = 'u8[393216]{0}', space=vmem, size = 0x60000, scoped, tag = 'input window, operand 1, single buffered']
    #allocation3 [shape = 's32[1]{0}', space=sflag, size = 0x4, scoped, tag = 'scoped memory for tpu_custom_call.1']
    #allocation4 [shape = 's32[1]{0}', space=sflag, size = 0x4, scoped, tag = 'scoped memory for tpu_custom_call.1']
    #allocation5 [shape = 'u8[32768]{0}', space=vmem, size = 0x8000, scoped, tag = 'output window, operand 0, single buffered']
    %11 = vsyncpa [#allocation3], 0
    %12 = vsyncpa [#allocation4], 0
    // Predicated region
    $region2: #{tpu_custom_call.1} parent=1 // pred_check
      _
    $region3: #{tpu_custom_call.1} parent=1 // pred_check_branch
      %14 = sbr.rel (0) target = $region5
    $region4: #{tpu_custom_call.1} parent=1 // pred_region
      _
    $region5: #{tpu_custom_call.1} parent=1 // pred_fallthru
      _
    // Predicated region
    $region6: #{tpu_custom_call.1} parent=1 // pred_check
      _
    $region7: #{tpu_custom_call.1} parent=1 // pred_check_branch
      %16 = sbr.rel (0) target = $region9
    $region8: #{tpu_custom_call.1} parent=1 // pred_region
      %18 = vsyncadd [#allocation3], 0
      %s19 = sshll.u32 %s1, 4
      %s20 = int_to_ptr.hbm [resolvable:$true] %s19
      %s21 = sshll.u32 [#allocation2], 4
      %s22 = int_to_ptr.vmem [resolvable:$true] %s21
      %27 = dma.hbm_to_vmem [thread:$0]  %s20, 12288, %s22, [#allocation3], 256, 256, 16
    $region9: #{tpu_custom_call.1} parent=1 // pred_fallthru
      _
    // Predicated region
    $region10: #{tpu_custom_call.1} parent=1 // pred_check
      _
    $region11: #{tpu_custom_call.1} parent=1 // pred_check_branch
      %29 = sbr.rel (0) target = $region13
    $region12: #{tpu_custom_call.1} parent=1 // pred_region
      _
    $region13: #{tpu_custom_call.1} parent=1 // pred_fallthru
      _
    // Predicated region
    $region14: #{tpu_custom_call.1} parent=1 // pred_check
      _
    $region15: #{tpu_custom_call.1} parent=1 // pred_check_branch
      %31 = sbr.rel (0) target = $region17
    $region16: #{tpu_custom_call.1} parent=1 // pred_region
      _
    $region17: #{tpu_custom_call.1} parent=1 // pred_fallthru
      _
    // Predicated region
    $region18: #{tpu_custom_call.1} parent=1 // pred_check
      _
    $region19: #{tpu_custom_call.1} parent=1 // pred_check_branch
      %33 = sbr.rel (0) target = $region21
    $region20: #{tpu_custom_call.1} parent=1 // pred_region
      _
    $region21: #{tpu_custom_call.1} parent=1 // pred_fallthru
      _
    // Predicated region
    $region22: #{tpu_custom_call.1} parent=1 // pred_check
      _
    $region23: #{tpu_custom_call.1} parent=1 // pred_check_branch
      %35 = sbr.rel (0) target = $region25
    $region24: #{tpu_custom_call.1} parent=1 // pred_region
      _
    $region25: #{tpu_custom_call.1} parent=1 // pred_fallthru
      _
    // Predicated region
    $region26: #{tpu_custom_call.1} parent=1 // pred_check
      _
    $region27: #{tpu_custom_call.1} parent=1 // pred_check_branch
      %37 = sbr.rel (0) target = $region29
    $region28: #{tpu_custom_call.1} parent=1 // pred_region
      %39 = dma.done [#allocation3], 12288
    $region29: #{tpu_custom_call.1} parent=1 // pred_fallthru
      _
    %v40 = vld [vmem:[%s0] sm:$0xff]
    %v41 = vld [vmem:[%s0 + $0x8] sm:$0xff]
    %v42 = vld [vmem:[%s0 + $0x10] sm:$0xff]
    %v43 = vld [vmem:[%s0 + $0x18] sm:$0xff]
    %v44 = vlaneseq
    %v45 = vshrl.u32 %v44, 7
    %v46 = vadd.s32 %v45, 8
    %v47 = vadd.s32 %v45, 16
    %v48 = vadd.s32 %v45, 24
    %vm49 = vcmp.lt.s32.totalorder %v45, 0
    %v50 = vsub.s32 0, %v45
    %v51 = vsel %vm49, %v50, %v45
    %v52 = vshrl.u32 %v51, 4
    %v53 = vand.u32 %v51, 15
    %v54 = vsub.s32 0, %v53
    %v55 = vsel %vm49, %v54, %v53
    %vm56 = vcmp.lt.s32.totalorder %v46, 0
    %v57 = vsub.s32 0, %v46
    %v58 = vsel %vm56, %v57, %v46
    %v59 = vshrl.u32 %v58, 4
    %v60 = vand.u32 %v58, 15
    %v61 = vsub.s32 0, %v60
    %v62 = vsel %vm56, %v61, %v60
    %vm63 = vcmp.lt.s32.totalorder %v47, 0
    %v64 = vsub.s32 0, %v47
    %v65 = vsel %vm63, %v64, %v47
    %v66 = vshrl.u32 %v65, 4
    %v67 = vand.u32 %v65, 15
    %v68 = vsub.s32 0, %v67
    %v69 = vsel %vm63, %v68, %v67
    %vm70 = vcmp.lt.s32.totalorder %v48, 0
    %v71 = vsub.s32 0, %v48
    %v72 = vsel %vm70, %v71, %v48
    %v73 = vshrl.u32 %v72, 4
    %v74 = vand.u32 %v72, 15
    %v75 = vsub.s32 0, %v74
    %v76 = vsel %vm70, %v75, %v74
    %vm77 = vcmp.ne.s32.totalorder %v55, 0
    %vm78 = vcmp.ne.s32.totalorder %v62, 0
    %vm79 = vcmp.ne.s32.totalorder %v69, 0
    %vm80 = vcmp.ne.s32.totalorder %v76, 0
    %vm81 = vcmp.lt.s32.totalorder %v55, 0
    %vm82 = vcmp.lt.s32.totalorder %v62, 0
    %vm83 = vcmp.lt.s32.totalorder %v69, 0
    %vm84 = vcmp.lt.s32.totalorder %v76, 0
    %vm85 = vmand %vm81, %vm77
    %vm86 = vmand %vm82, %vm78
    %vm87 = vmand %vm83, %vm79
    %vm88 = vmand %vm84, %vm80
    %v89 = vadd.s32 %v55, 16
    %v90 = vadd.s32 %v62, 16
    %v91 = vadd.s32 %v69, 16
    %v92 = vadd.s32 %v76, 16
    %v93 = vsel %vm85, %v89, %v55
    %v94 = vsel %vm86, %v90, %v62
    %v95 = vsel %vm87, %v91, %v69
    %v96 = vsel %vm88, %v92, %v76
    %vm97 = vcmp.eq.s32.totalorder %v93, 0
    %vm98 = vcmp.eq.s32.totalorder %v94, 0
    %vm99 = vcmp.eq.s32.totalorder %v95, 0
    %vm100 = vcmp.eq.s32.totalorder %v96, 0
    %v101 = vrot.slane %v40, 7
    %v102 = vrot.slane %v41, 7
    %v103 = vrot.slane %v42, 7
    %v104 = vrot.slane %v43, 7
    %vm105 = vcmp.lt.s32.totalorder %v45, 1
    %v106 = vsel %vm105, %v103, %v104
    %v107 = vsel %vm105, %v102, %v103
    %v108 = vsel %vm105, %v101, %v102
    %v109 = vsel %vm105, %v104, %v101
    %v110 = vsel %vm97, 0.0, %v109
    %v111 = vsel %vm98, 0.0, %v108
    %v112 = vsel %vm99, 0.0, %v107
    %v113 = vsel %vm100, 0.0, %v106
    %vm114 = vcmp.eq.s32.totalorder %v93, 15
    %vm115 = vcmp.eq.s32.totalorder %v94, 15
    %vm116 = vcmp.eq.s32.totalorder %v95, 15
    %vm117 = vcmp.eq.s32.totalorder %v96, 15
    %v118 = vrot.slane %v40, 1
    %v119 = vrot.slane %v41, 1
    %v120 = vrot.slane %v42, 1
    %v121 = vrot.slane %v43, 1
    %vm122 = vcmp.lt.s32.totalorder %v45, 7
    %v123 = vsel %vm122, %v120, %v121
    %v124 = vsel %vm122, %v119, %v120
    %v125 = vsel %vm122, %v118, %v119
    %v126 = vsel %vm122, %v121, %v118
    %v127 = vsel %vm114, 0.0, %v125
    %v128 = vsel %vm115, 0.0, %v124
    %v129 = vsel %vm116, 0.0, %v123
    %v130 = vsel %vm117, 0.0, %v126
    %v131 = vld [vmem:[#allocation2] sm:$0xff]
    %v132 = vld [vmem:[#allocation2 + $0x8] sm:$0xff]
    %v133 = vld [vmem:[#allocation2 + $0x10] sm:$0xff]
    %v134 = vld [vmem:[#allocation2 + $0x18] sm:$0xff]
    %v135 = vld [vmem:[#allocation2 + $0x20] sm:$0xff]
    %v136 = vld [vmem:[#allocation2 + $0x28] sm:$0xff]
    %v137 = vld [vmem:[#allocation2 + $0x30] sm:$0xff]
    %v138 = vld [vmem:[#allocation2 + $0x38] sm:$0xff]
    %v139 = vld [vmem:[#allocation2 + $0x40] sm:$0xff]
    %v140 = vld [vmem:[#allocation2 + $0x48] sm:$0xff]
    %v141 = vld [vmem:[#allocation2 + $0x50] sm:$0xff]
    %v142 = vld [vmem:[#allocation2 + $0x58] sm:$0xff]
    %v143 = vld [vmem:[#allocation2 + $0x60] sm:$0xff]
    %v144 = vld [vmem:[#allocation2 + $0x68] sm:$0xff]
    %v145 = vld [vmem:[#allocation2 + $0x70] sm:$0xff]
    %v146 = vld [vmem:[#allocation2 + $0x78] sm:$0xff]
    %v147 = vld [vmem:[#allocation2 + $0x80] sm:$0xff]
    %v148 = vld [vmem:[#allocation2 + $0x88] sm:$0xff]
    %v149 = vld [vmem:[#allocation2 + $0x90] sm:$0xff]
    %v150 = vld [vmem:[#allocation2 + $0x98] sm:$0xff]
    %v151 = vld [vmem:[#allocation2 + $0xa0] sm:$0xff]
    %v152 = vld [vmem:[#allocation2 + $0xa8] sm:$0xff]
    %v153 = vld [vmem:[#allocation2 + $0xb0] sm:$0xff]
    %v154 = vld [vmem:[#allocation2 + $0xb8] sm:$0xff]
    %v155 = vld [vmem:[#allocation2 + $0xc0] sm:$0xff]
    %v156 = vld [vmem:[#allocation2 + $0xc8] sm:$0xff]
    %v157 = vld [vmem:[#allocation2 + $0xd0] sm:$0xff]
    %v158 = vld [vmem:[#allocation2 + $0xd8] sm:$0xff]
    %v159 = vld [vmem:[#allocation2 + $0xe0] sm:$0xff]
    %v160 = vld [vmem:[#allocation2 + $0xe8] sm:$0xff]
    %v161 = vld [vmem:[#allocation2 + $0xf0] sm:$0xff]
    %v162 = vld [vmem:[#allocation2 + $0xf8] sm:$0xff]
    %v163 = vld [vmem:[#allocation2 + $0x100] sm:$0xff]
    %v164 = vld [vmem:[#allocation2 + $0x108] sm:$0xff]
    %v165 = vld [vmem:[#allocation2 + $0x110] sm:$0xff]
    %v166 = vld [vmem:[#allocation2 + $0x118] sm:$0xff]
    %v167 = vld [vmem:[#allocation2 + $0x120] sm:$0xff]
    %v168 = vld [vmem:[#allocation2 + $0x128] sm:$0xff]
    %v169 = vld [vmem:[#allocation2 + $0x130] sm:$0xff]
    %v170 = vld [vmem:[#allocation2 + $0x138] sm:$0xff]
    %v171 = vld [vmem:[#allocation2 + $0x140] sm:$0xff]
    %v172 = vld [vmem:[#allocation2 + $0x148] sm:$0xff]
    %v173 = vld [vmem:[#allocation2 + $0x150] sm:$0xff]
    %v174 = vld [vmem:[#allocation2 + $0x158] sm:$0xff]
    %v175 = vld [vmem:[#allocation2 + $0x160] sm:$0xff]
    %v176 = vld [vmem:[#allocation2 + $0x168] sm:$0xff]
    %v177 = vld [vmem:[#allocation2 + $0x170] sm:$0xff]
    %v178 = vld [vmem:[#allocation2 + $0x178] sm:$0xff]
    %v179 = vld [vmem:[#allocation2 + $0x180] sm:$0xff]
    %v180 = vld [vmem:[#allocation2 + $0x188] sm:$0xff]
    %v181 = vld [vmem:[#allocation2 + $0x190] sm:$0xff]
    %v182 = vld [vmem:[#allocation2 + $0x198] sm:$0xff]
    %v183 = vld [vmem:[#allocation2 + $0x1a0] sm:$0xff]
    %v184 = vld [vmem:[#allocation2 + $0x1a8] sm:$0xff]
    %v185 = vld [vmem:[#allocation2 + $0x1b0] sm:$0xff]
    %v186 = vld [vmem:[#allocation2 + $0x1b8] sm:$0xff]
    %v187 = vld [vmem:[#allocation2 + $0x1c0] sm:$0xff]
    %v188 = vld [vmem:[#allocation2 + $0x1c8] sm:$0xff]
    %v189 = vld [vmem:[#allocation2 + $0x1d0] sm:$0xff]
    %v190 = vld [vmem:[#allocation2 + $0x1d8] sm:$0xff]
    %v191 = vld [vmem:[#allocation2 + $0x1e0] sm:$0xff]
    %v192 = vld [vmem:[#allocation2 + $0x1e8] sm:$0xff]
    %v193 = vld [vmem:[#allocation2 + $0x1f0] sm:$0xff]
    %v194 = vld [vmem:[#allocation2 + $0x1f8] sm:$0xff]
    %v195 = vld [vmem:[#allocation2 + $0x200] sm:$0xff]
    %v196 = vld [vmem:[#allocation2 + $0x208] sm:$0xff]
    %v197 = vld [vmem:[#allocation2 + $0x210] sm:$0xff]
    %v198 = vld [vmem:[#allocation2 + $0x218] sm:$0xff]
    %v199 = vld [vmem:[#allocation2 + $0x220] sm:$0xff]
    %v200 = vld [vmem:[#allocation2 + $0x228] sm:$0xff]
    %v201 = vld [vmem:[#allocation2 + $0x230] sm:$0xff]
    %v202 = vld [vmem:[#allocation2 + $0x238] sm:$0xff]
    %v203 = vld [vmem:[#allocation2 + $0x240] sm:$0xff]
    %v204 = vld [vmem:[#allocation2 + $0x248] sm:$0xff]
    %v205 = vld [vmem:[#allocation2 + $0x250] sm:$0xff]
    %v206 = vld [vmem:[#allocation2 + $0x258] sm:$0xff]
    %v207 = vld [vmem:[#allocation2 + $0x260] sm:$0xff]
    %v208 = vld [vmem:[#allocation2 + $0x268] sm:$0xff]
    %v209 = vld [vmem:[#allocation2 + $0x270] sm:$0xff]
    %v210 = vld [vmem:[#allocation2 + $0x278] sm:$0xff]
    %v211 = vld [vmem:[#allocation2 + $0x280] sm:$0xff]
    %v212 = vld [vmem:[#allocation2 + $0x288] sm:$0xff]
    %v213 = vld [vmem:[#allocation2 + $0x290] sm:$0xff]
    %v214 = vld [vmem:[#allocation2 + $0x298] sm:$0xff]
    %v215 = vld [vmem:[#allocation2 + $0x2a0] sm:$0xff]
    %v216 = vld [vmem:[#allocation2 + $0x2a8] sm:$0xff]
    %v217 = vld [vmem:[#allocation2 + $0x2b0] sm:$0xff]
    %v218 = vld [vmem:[#allocation2 + $0x2b8] sm:$0xff]
    %v219 = vld [vmem:[#allocation2 + $0x2c0] sm:$0xff]
    %v220 = vld [vmem:[#allocation2 + $0x2c8] sm:$0xff]
    %v221 = vld [vmem:[#allocation2 + $0x2d0] sm:$0xff]
    %v222 = vld [vmem:[#allocation2 + $0x2d8] sm:$0xff]
    %v223 = vld [vmem:[#allocation2 + $0x2e0] sm:$0xff]
    %v224 = vld [vmem:[#allocation2 + $0x2e8] sm:$0xff]
    %v225 = vld [vmem:[#allocation2 + $0x2f0] sm:$0xff]
    %v226 = vld [vmem:[#allocation2 + $0x2f8] sm:$0xff]
    %227 = vmatpush.msra.mxu0 %v161
    %228 = vmatpush.msra.mxu0 %v159
    %229 = vmatpush.msra.mxu0 %v157
    %230 = vmatpush.msra.mxu0 %v155
    %231 = vmatpush.msra.mxu0 %v153
    %232 = vmatpush.msra.mxu0 %v151
    %233 = vmatpush.msra.mxu0 %v149
    %234 = vmatpush.msra.mxu0 %v147
    %235 = vmatpush.msra.mxu0 %v145
    %236 = vmatpush.msra.mxu0 %v143
    %237 = vmatpush.msra.mxu0 %v141
    %238 = vmatpush.msra.mxu0 %v139
    %239 = vmatpush.msra.mxu0 %v137
    %240 = vmatpush.msra.mxu0 %v135
    %241 = vmatpush.msra.mxu0 %v133
    %242 = vmatpush.msra.mxu0 %v131
    %243 = vmatmul.f32.gmra.mxu0 %v110
    %v244 = vpop.f32.mrf.mxu0
    %v245 = vadd.f32 0.0, %v244
    %246 = vmatmul.f32.gmra.mxu0 %v111
    %v247 = vpop.f32.mrf.mxu0
    %v248 = vadd.f32 0.0, %v247
    %249 = vmatmul.f32.gmra.mxu0 %v112
    %v250 = vpop.f32.mrf.mxu0
    %v251 = vadd.f32 0.0, %v250
    %252 = vmatmul.f32.gmra.mxu0 %v113
    %v253 = vpop.f32.mrf.mxu0
    %v254 = vadd.f32 0.0, %v253
    %255 = vdwg.mxu0
    %256 = vmatpush.msra.mxu0 %v193
    %257 = vmatpush.msra.mxu0 %v191
    %258 = vmatpush.msra.mxu0 %v189
    %259 = vmatpush.msra.mxu0 %v187
    %260 = vmatpush.msra.mxu0 %v185
    %261 = vmatpush.msra.mxu0 %v183
    %262 = vmatpush.msra.mxu0 %v181
    %263 = vmatpush.msra.mxu0 %v179
    %264 = vmatpush.msra.mxu0 %v177
    %265 = vmatpush.msra.mxu0 %v175
    %266 = vmatpush.msra.mxu0 %v173
    %267 = vmatpush.msra.mxu0 %v171
    %268 = vmatpush.msra.mxu0 %v169
    %269 = vmatpush.msra.mxu0 %v167
    %270 = vmatpush.msra.mxu0 %v165
    %271 = vmatpush.msra.mxu0 %v163
    %272 = vmatmul.f32.gmra.mxu0 %v40
    %v273 = vpop.f32.mrf.mxu0
    %v274 = vadd.f32 %v245, %v273
    %275 = vmatmul.f32.gmra.mxu0 %v41
    %v276 = vpop.f32.mrf.mxu0
    %v277 = vadd.f32 %v248, %v276
    %278 = vmatmul.f32.gmra.mxu0 %v42
    %v279 = vpop.f32.mrf.mxu0
    %v280 = vadd.f32 %v251, %v279
    %281 = vmatmul.f32.gmra.mxu0 %v43
    %v282 = vpop.f32.mrf.mxu0
    %v283 = vadd.f32 %v254, %v282
    %284 = vdwg.mxu0
    %285 = vmatpush.msra.mxu0 %v225
    %286 = vmatpush.msra.mxu0 %v223
    %287 = vmatpush.msra.mxu0 %v221
    %288 = vmatpush.msra.mxu0 %v219
    %289 = vmatpush.msra.mxu0 %v217
    %290 = vmatpush.msra.mxu0 %v215
    %291 = vmatpush.msra.mxu0 %v213
    %292 = vmatpush.msra.mxu0 %v211
    %293 = vmatpush.msra.mxu0 %v209
    %294 = vmatpush.msra.mxu0 %v207
    %295 = vmatpush.msra.mxu0 %v205
    %296 = vmatpush.msra.mxu0 %v203
    %297 = vmatpush.msra.mxu0 %v201
    %298 = vmatpush.msra.mxu0 %v199
    %299 = vmatpush.msra.mxu0 %v197
    %300 = vmatpush.msra.mxu0 %v195
    %301 = vmatmul.f32.gmra.mxu0 %v127
    %v302 = vpop.f32.mrf.mxu0
    %v303 = vadd.f32 %v274, %v302
    %304 = vmatmul.f32.gmra.mxu0 %v128
    %v305 = vpop.f32.mrf.mxu0
    %v306 = vadd.f32 %v277, %v305
    %307 = vmatmul.f32.gmra.mxu0 %v129
    %v308 = vpop.f32.mrf.mxu0
    %v309 = vadd.f32 %v280, %v308
    %310 = vmatmul.f32.gmra.mxu0 %v130
    %v311 = vpop.f32.mrf.mxu0
    %v312 = vadd.f32 %v283, %v311
    %313 = vdwg.mxu0
    %314 = vmatpush.msra.mxu0 %v162
    %315 = vmatpush.msra.mxu0 %v160
    %316 = vmatpush.msra.mxu0 %v158
    %317 = vmatpush.msra.mxu0 %v156
    %318 = vmatpush.msra.mxu0 %v154
    %319 = vmatpush.msra.mxu0 %v152
    %320 = vmatpush.msra.mxu0 %v150
    %321 = vmatpush.msra.mxu0 %v148
    %322 = vmatpush.msra.mxu0 %v146
    %323 = vmatpush.msra.mxu0 %v144
    %324 = vmatpush.msra.mxu0 %v142
    %325 = vmatpush.msra.mxu0 %v140
    %326 = vmatpush.msra.mxu0 %v138
    %327 = vmatpush.msra.mxu0 %v136
    %328 = vmatpush.msra.mxu0 %v134
    %329 = vmatpush.msra.mxu0 %v132
    %330 = vmatmul.f32.gmra.mxu0 %v110
    %v331 = vpop.f32.mrf.mxu0
    %v332 = vadd.f32 0.0, %v331
    %333 = vmatmul.f32.gmra.mxu0 %v111
    %v334 = vpop.f32.mrf.mxu0
    %v335 = vadd.f32 0.0, %v334
    %336 = vmatmul.f32.gmra.mxu0 %v112
    %v337 = vpop.f32.mrf.mxu0
    %v338 = vadd.f32 0.0, %v337
    %339 = vmatmul.f32.gmra.mxu0 %v113
    %v340 = vpop.f32.mrf.mxu0
    %v341 = vadd.f32 0.0, %v340
    %342 = vdwg.mxu0
    %343 = vmatpush.msra.mxu0 %v194
    %344 = vmatpush.msra.mxu0 %v192
    %345 = vmatpush.msra.mxu0 %v190
    %346 = vmatpush.msra.mxu0 %v188
    %347 = vmatpush.msra.mxu0 %v186
    %348 = vmatpush.msra.mxu0 %v184
    %349 = vmatpush.msra.mxu0 %v182
    %350 = vmatpush.msra.mxu0 %v180
    %351 = vmatpush.msra.mxu0 %v178
    %352 = vmatpush.msra.mxu0 %v176
    %353 = vmatpush.msra.mxu0 %v174
    %354 = vmatpush.msra.mxu0 %v172
    %355 = vmatpush.msra.mxu0 %v170
    %356 = vmatpush.msra.mxu0 %v168
    %357 = vmatpush.msra.mxu0 %v166
    %358 = vmatpush.msra.mxu0 %v164
    %359 = vmatmul.f32.gmra.mxu0 %v40
    %v360 = vpop.f32.mrf.mxu0
    %v361 = vadd.f32 %v332, %v360
    %362 = vmatmul.f32.gmra.mxu0 %v41
    %v363 = vpop.f32.mrf.mxu0
    %v364 = vadd.f32 %v335, %v363
    %365 = vmatmul.f32.gmra.mxu0 %v42
    %v366 = vpop.f32.mrf.mxu0
    %v367 = vadd.f32 %v338, %v366
    %368 = vmatmul.f32.gmra.mxu0 %v43
    %v369 = vpop.f32.mrf.mxu0
    %v370 = vadd.f32 %v341, %v369
    %371 = vdwg.mxu0
    %372 = vmatpush.msra.mxu0 %v226
    %373 = vmatpush.msra.mxu0 %v224
    %374 = vmatpush.msra.mxu0 %v222
    %375 = vmatpush.msra.mxu0 %v220
    %376 = vmatpush.msra.mxu0 %v218
    %377 = vmatpush.msra.mxu0 %v216
    %378 = vmatpush.msra.mxu0 %v214
    %379 = vmatpush.msra.mxu0 %v212
    %380 = vmatpush.msra.mxu0 %v210
    %381 = vmatpush.msra.mxu0 %v208
    %382 = vmatpush.msra.mxu0 %v206
    %383 = vmatpush.msra.mxu0 %v204
    %384 = vmatpush.msra.mxu0 %v202
    %385 = vmatpush.msra.mxu0 %v200
    %386 = vmatpush.msra.mxu0 %v198
    %387 = vmatpush.msra.mxu0 %v196
    %388 = vmatmul.f32.gmra.mxu0 %v127
    %v389 = vpop.f32.mrf.mxu0
    %v390 = vadd.f32 %v361, %v389
    %391 = vmatmul.f32.gmra.mxu0 %v128
    %v392 = vpop.f32.mrf.mxu0
    %v393 = vadd.f32 %v364, %v392
    %394 = vmatmul.f32.gmra.mxu0 %v129
    %v395 = vpop.f32.mrf.mxu0
    %v396 = vadd.f32 %v367, %v395
    %397 = vmatmul.f32.gmra.mxu0 %v130
    %v398 = vpop.f32.mrf.mxu0
    %v399 = vadd.f32 %v370, %v398
    %400 = vdwg.mxu0
    %vm401 = vcmask 261120
    %v403 = vsel %vm401, 1.0, 0
    %405 = vmatpush.msra.mxu0 0.0
    %406 = vmatpush.msra.mxu0 0.0
    %407 = vmatpush.msra.mxu0 0.0
    %408 = vmatpush.msra.mxu0 0.0
    %409 = vmatpush.msra.mxu0 0.0
    %410 = vmatpush.msra.mxu0 0.0
    %411 = vmatpush.msra.mxu0 0.0
    %412 = vmatpush.msra.mxu0 0.0
    %413 = vmatpush.msra.mxu0 0.0
    %414 = vmatpush.msra.mxu0 0.0
    %415 = vmatpush.msra.mxu0 0.0
    %416 = vmatpush.msra.mxu0 0.0
    %417 = vmatpush.msra.mxu0 %v312
    %418 = vmatpush.msra.mxu0 %v309
    %419 = vmatpush.msra.mxu0 %v306
    %420 = vmatpush.msra.mxu0 %v303
    %421 = vmatmul.f32.gmra.mxu0 %v403
    %v422 = vpop.f32.mrf.mxu0
    %v423 = vadd.f32 0.0, %v422
    %424 = vdwg.mxu0
    %425 = vmatpush.msra.mxu0 0.0
    %426 = vmatpush.msra.mxu0 0.0
    %427 = vmatpush.msra.mxu0 0.0
    %428 = vmatpush.msra.mxu0 0.0
    %429 = vmatpush.msra.mxu0 0.0
    %430 = vmatpush.msra.mxu0 0.0
    %431 = vmatpush.msra.mxu0 0.0
    %432 = vmatpush.msra.mxu0 0.0
    %433 = vmatpush.msra.mxu0 0.0
    %434 = vmatpush.msra.mxu0 0.0
    %435 = vmatpush.msra.mxu0 0.0
    %436 = vmatpush.msra.mxu0 0.0
    %437 = vmatpush.msra.mxu0 %v399
    %438 = vmatpush.msra.mxu0 %v396
    %439 = vmatpush.msra.mxu0 %v393
    %440 = vmatpush.msra.mxu0 %v390
    %441 = vmatmul.f32.gmra.mxu0 %v403
    %v442 = vpop.f32.mrf.mxu0
    %v443 = vadd.f32 0.0, %v442
    %444 = vdwg.mxu0
    %v445 = vmul.f32 %v303, %v303
    %v446 = vmul.f32 %v390, %v390
    %v447 = vmul.f32 %v306, %v306
    %v448 = vmul.f32 %v393, %v393
    %v449 = vmul.f32 %v309, %v309
    %v450 = vmul.f32 %v396, %v396
    %v451 = vmul.f32 %v312, %v312
    %v452 = vmul.f32 %v399, %v399
    %453 = vmatpush.msra.mxu0 0.0
    %454 = vmatpush.msra.mxu0 0.0
    %455 = vmatpush.msra.mxu0 0.0
    %456 = vmatpush.msra.mxu0 0.0
    %457 = vmatpush.msra.mxu0 0.0
    %458 = vmatpush.msra.mxu0 0.0
    %459 = vmatpush.msra.mxu0 0.0
    %460 = vmatpush.msra.mxu0 0.0
    %461 = vmatpush.msra.mxu0 0.0
    %462 = vmatpush.msra.mxu0 0.0
    %463 = vmatpush.msra.mxu0 0.0
    %464 = vmatpush.msra.mxu0 0.0
    %465 = vmatpush.msra.mxu0 %v451
    %466 = vmatpush.msra.mxu0 %v449
    %467 = vmatpush.msra.mxu0 %v447
    %468 = vmatpush.msra.mxu0 %v445
    %469 = vmatmul.f32.gmra.mxu0 %v403
    %v470 = vpop.f32.mrf.mxu0
    %v471 = vadd.f32 0.0, %v470
    %472 = vdwg.mxu0
    %473 = vmatpush.msra.mxu0 0.0
    %474 = vmatpush.msra.mxu0 0.0
    %475 = vmatpush.msra.mxu0 0.0
    %476 = vmatpush.msra.mxu0 0.0
    %477 = vmatpush.msra.mxu0 0.0
    %478 = vmatpush.msra.mxu0 0.0
    %479 = vmatpush.msra.mxu0 0.0
    %480 = vmatpush.msra.mxu0 0.0
    %481 = vmatpush.msra.mxu0 0.0
    %482 = vmatpush.msra.mxu0 0.0
    %483 = vmatpush.msra.mxu0 0.0
    %484 = vmatpush.msra.mxu0 0.0
    %485 = vmatpush.msra.mxu0 %v452
    %486 = vmatpush.msra.mxu0 %v450
    %487 = vmatpush.msra.mxu0 %v448
    %488 = vmatpush.msra.mxu0 %v446
    %489 = vmatmul.f32.gmra.mxu0 %v403
    %v490 = vpop.f32.mrf.mxu0
    %v491 = vadd.f32 0.0, %v490
    %492 = vdwg.mxu0
    %v493 = vld [vmem:[%s2] sm:$0xff]
    %v494 = vld [vmem:[%s2 + $0x8] sm:$0xff]
    %v495 = vld [vmem:[%s2 + $0x10] sm:$0xff]
    %v496 = vld [vmem:[%s2 + $0x18] sm:$0xff]
    %v497 = vld [vmem:[%s2 + $0x20] sm:$0xff]
    %v498 = vld [vmem:[%s2 + $0x28] sm:$0xff]
    %v499 = vld [vmem:[%s2 + $0x30] sm:$0xff]
    %v500 = vld [vmem:[%s2 + $0x38] sm:$0xff]
    %v501 = vld [vmem:[%s2 + $0x40] sm:$0xff]
    %v502 = vld [vmem:[%s2 + $0x48] sm:$0xff]
    %v503 = vld [vmem:[%s2 + $0x50] sm:$0xff]
    %v504 = vld [vmem:[%s2 + $0x58] sm:$0xff]
    %v505 = vld [vmem:[%s2 + $0x60] sm:$0xff]
    %v506 = vld [vmem:[%s2 + $0x68] sm:$0xff]
    %v507 = vld [vmem:[%s2 + $0x70] sm:$0xff]
    %v508 = vld [vmem:[%s2 + $0x78] sm:$0xff]
    %v509 = vld [vmem:[%s2 + $0x80] sm:$0xff]
    %v510 = vld [vmem:[%s2 + $0x88] sm:$0xff]
    %v511 = vld [vmem:[%s2 + $0x90] sm:$0xff]
    %v512 = vld [vmem:[%s2 + $0x98] sm:$0xff]
    %v513 = vld [vmem:[%s2 + $0xa0] sm:$0xff]
    %v514 = vld [vmem:[%s2 + $0xa8] sm:$0xff]
    %v515 = vld [vmem:[%s2 + $0xb0] sm:$0xff]
    %v516 = vld [vmem:[%s2 + $0xb8] sm:$0xff]
    %v517 = vld [vmem:[%s2 + $0xc0] sm:$0xff]
    %v518 = vld [vmem:[%s2 + $0xc8] sm:$0xff]
    %v519 = vld [vmem:[%s2 + $0xd0] sm:$0xff]
    %v520 = vld [vmem:[%s2 + $0xd8] sm:$0xff]
    %v521 = vld [vmem:[%s2 + $0xe0] sm:$0xff]
    %v522 = vld [vmem:[%s2 + $0xe8] sm:$0xff]
    %v523 = vld [vmem:[%s2 + $0xf0] sm:$0xff]
    %v524 = vld [vmem:[%s2 + $0xf8] sm:$0xff]
    %525 = vmatpush.msra.mxu0 %v508
    %526 = vmatpush.msra.mxu0 %v507
    %527 = vmatpush.msra.mxu0 %v506
    %528 = vmatpush.msra.mxu0 %v505
    %529 = vmatpush.msra.mxu0 %v504
    %530 = vmatpush.msra.mxu0 %v503
    %531 = vmatpush.msra.mxu0 %v502
    %532 = vmatpush.msra.mxu0 %v501
    %533 = vmatpush.msra.mxu0 %v500
    %534 = vmatpush.msra.mxu0 %v499
    %535 = vmatpush.msra.mxu0 %v498
    %536 = vmatpush.msra.mxu0 %v497
    %537 = vmatpush.msra.mxu0 %v496
    %538 = vmatpush.msra.mxu0 %v495
    %539 = vmatpush.msra.mxu0 %v494
    %540 = vmatpush.msra.mxu0 %v493
    %541 = vmatmul.f32.gmra.mxu0 %v423
    %v542 = vpop.f32.mrf.mxu0
    %v543 = vadd.f32 0.0, %v542
    %544 = vdwg.mxu0
    %545 = vmatpush.msra.mxu0 %v524
    %546 = vmatpush.msra.mxu0 %v523
    %547 = vmatpush.msra.mxu0 %v522
    %548 = vmatpush.msra.mxu0 %v521
    %549 = vmatpush.msra.mxu0 %v520
    %550 = vmatpush.msra.mxu0 %v519
    %551 = vmatpush.msra.mxu0 %v518
    %552 = vmatpush.msra.mxu0 %v517
    %553 = vmatpush.msra.mxu0 %v516
    %554 = vmatpush.msra.mxu0 %v515
    %555 = vmatpush.msra.mxu0 %v514
    %556 = vmatpush.msra.mxu0 %v513
    %557 = vmatpush.msra.mxu0 %v512
    %558 = vmatpush.msra.mxu0 %v511
    %559 = vmatpush.msra.mxu0 %v510
    %560 = vmatpush.msra.mxu0 %v509
    %561 = vmatmul.f32.gmra.mxu0 %v443
    %v562 = vpop.f32.mrf.mxu0
    %v563 = vadd.f32 %v543, %v562
    %564 = vdwg.mxu0
    %565 = vmatpush.msra.mxu0 %v508
    %566 = vmatpush.msra.mxu0 %v507
    %567 = vmatpush.msra.mxu0 %v506
    %568 = vmatpush.msra.mxu0 %v505
    %569 = vmatpush.msra.mxu0 %v504
    %570 = vmatpush.msra.mxu0 %v503
    %571 = vmatpush.msra.mxu0 %v502
    %572 = vmatpush.msra.mxu0 %v501
    %573 = vmatpush.msra.mxu0 %v500
    %574 = vmatpush.msra.mxu0 %v499
    %575 = vmatpush.msra.mxu0 %v498
    %576 = vmatpush.msra.mxu0 %v497
    %577 = vmatpush.msra.mxu0 %v496
    %578 = vmatpush.msra.mxu0 %v495
    %579 = vmatpush.msra.mxu0 %v494
    %580 = vmatpush.msra.mxu0 %v493
    %581 = vmatmul.f32.gmra.mxu0 %v471
    %v582 = vpop.f32.mrf.mxu0
    %v583 = vadd.f32 0.0, %v582
    %584 = vdwg.mxu0
    %585 = vmatpush.msra.mxu0 %v524
    %586 = vmatpush.msra.mxu0 %v523
    %587 = vmatpush.msra.mxu0 %v522
    %588 = vmatpush.msra.mxu0 %v521
    %589 = vmatpush.msra.mxu0 %v520
    %590 = vmatpush.msra.mxu0 %v519
    %591 = vmatpush.msra.mxu0 %v518
    %592 = vmatpush.msra.mxu0 %v517
    %593 = vmatpush.msra.mxu0 %v516
    %594 = vmatpush.msra.mxu0 %v515
    %595 = vmatpush.msra.mxu0 %v514
    %596 = vmatpush.msra.mxu0 %v513
    %597 = vmatpush.msra.mxu0 %v512
    %598 = vmatpush.msra.mxu0 %v511
    %599 = vmatpush.msra.mxu0 %v510
    %600 = vmatpush.msra.mxu0 %v509
    %601 = vmatmul.f32.gmra.mxu0 %v491
    %v602 = vpop.f32.mrf.mxu0
    %v603 = vadd.f32 %v583, %v602
    %604 = vdwg.mxu0
    %v605 = vmul.f32 %v563, 0.001953125
    %v606 = vmul.f32 %v603, 0.001953125
    %v607 = vmul.f32 %v605, %v605
    %v608 = vsub.f32 %v606, %v607
    %v609 = vmax.f32 %v608, 0.0
    %v610 = vadd.f32 %v609, 0.0001
    %v611 = vrsqrt.pop %v610
    %v612 = vmul.f32 %v611, %v610
    %v613 = vmul.f32 %v612, %v611
    %v614 = vmul.f32 0.5, %v613
    %v615 = vsub.f32 1.5, %v614
    %v616 = vmul.f32 %v611, %v615
    %vm617 = vweird.f32 %v610
    %vm618 = vweird.f32 %v611
    %vm619 = vmor %vm617, %vm618
    %v620 = vsel %vm619, %v611, %v616
    %v621 = vld [vmem:[%s4] sm:$0x1]
    %v622 = vmul.f32 %v621, %v620
    %v623 = vld [vmem:[%s5] sm:$0x1]
    %v624 = vmul.f32 %v605, %v622
    %v625 = vsub.f32 %v623, %v624
    %v627 = vperm.slane %v625, 0
    %vm629 = vcmask 1040384
    %v630 = vsel %vm629, %v622, %v627
    %v631 = vld [vmem:[%s3] sm:$0xff]
    %v632 = vld [vmem:[%s3 + $0x8] sm:$0xff]
    %v633 = vld [vmem:[%s3 + $0x10] sm:$0xff]
    %v634 = vld [vmem:[%s3 + $0x18] sm:$0xff]
    %vm635 = vcmask 130048
    %v637 = vsel %vm635, %v630, 0
    %639 = vmatpush.msra.mxu0 0.0
    %640 = vmatpush.msra.mxu0 0.0
    %641 = vmatpush.msra.mxu0 0.0
    %642 = vmatpush.msra.mxu0 0.0
    %643 = vmatpush.msra.mxu0 0.0
    %644 = vmatpush.msra.mxu0 0.0
    %645 = vmatpush.msra.mxu0 0.0
    %646 = vmatpush.msra.mxu0 0.0
    %647 = vmatpush.msra.mxu0 0.0
    %648 = vmatpush.msra.mxu0 0.0
    %649 = vmatpush.msra.mxu0 0.0
    %650 = vmatpush.msra.mxu0 0.0
    %651 = vmatpush.msra.mxu0 0.0
    %652 = vmatpush.msra.mxu0 0.0
    %653 = vmatpush.msra.mxu0 %v633
    %654 = vmatpush.msra.mxu0 %v631
    %655 = vmatmul.f32.gmra.mxu0 %v637
    %v656 = vpop.f32.mrf.mxu0
    %v657 = vadd.f32 0.0, %v656
    %658 = vdwg.mxu0
    %659 = vmatpush.msra.mxu0 0.0
    %660 = vmatpush.msra.mxu0 0.0
    %661 = vmatpush.msra.mxu0 0.0
    %662 = vmatpush.msra.mxu0 0.0
    %663 = vmatpush.msra.mxu0 0.0
    %664 = vmatpush.msra.mxu0 0.0
    %665 = vmatpush.msra.mxu0 0.0
    %666 = vmatpush.msra.mxu0 0.0
    %667 = vmatpush.msra.mxu0 0.0
    %668 = vmatpush.msra.mxu0 0.0
    %669 = vmatpush.msra.mxu0 0.0
    %670 = vmatpush.msra.mxu0 0.0
    %671 = vmatpush.msra.mxu0 0.0
    %672 = vmatpush.msra.mxu0 0.0
    %673 = vmatpush.msra.mxu0 %v634
    %674 = vmatpush.msra.mxu0 %v632
    %675 = vmatmul.f32.gmra.mxu0 %v637
    %v676 = vpop.f32.mrf.mxu0
    %v677 = vadd.f32 0.0, %v676
    %678 = vdwg.mxu0
    %v679 = vperm.slane %v657, 0
    %v680 = vperm.slane %v677, 0
    %v681 = vmul.f32 %v303, %v679
    %v682 = vmul.f32 %v390, %v680
    %v683 = vmul.f32 %v306, %v679
    %v684 = vmul.f32 %v393, %v680
    %v685 = vmul.f32 %v309, %v679
    %v686 = vmul.f32 %v396, %v680
    %v687 = vmul.f32 %v312, %v679
    %v688 = vmul.f32 %v399, %v680
    %v689 = vperm.slane %v657, 1
    %v690 = vperm.slane %v677, 1
    %v691 = vadd.f32 %v681, %v689
    %v692 = vadd.f32 %v682, %v690
    %v693 = vadd.f32 %v683, %v689
    %v694 = vadd.f32 %v684, %v690
    %v695 = vadd.f32 %v685, %v689
    %v696 = vadd.f32 %v686, %v690
    %v697 = vadd.f32 %v687, %v689
    %v698 = vadd.f32 %v688, %v690
    %v699 = vmax.f32 %v691, 0.0
    %v700 = vmax.f32 %v692, 0.0
    %v701 = vmax.f32 %v693, 0.0
    %v702 = vmax.f32 %v694, 0.0
    %v703 = vmax.f32 %v695, 0.0
    %v704 = vmax.f32 %v696, 0.0
    %v705 = vmax.f32 %v697, 0.0
    %v706 = vmax.f32 %v698, 0.0
    %707 = vst [vmem:[#allocation5] sm:$0xff] %v699
    %708 = vst [vmem:[#allocation5 + $0x8] sm:$0xff] %v700
    %709 = vst [vmem:[#allocation5 + $0x10] sm:$0xff] %v701
    %710 = vst [vmem:[#allocation5 + $0x18] sm:$0xff] %v702
    %711 = vst [vmem:[#allocation5 + $0x20] sm:$0xff] %v703
    %712 = vst [vmem:[#allocation5 + $0x28] sm:$0xff] %v704
    %713 = vst [vmem:[#allocation5 + $0x30] sm:$0xff] %v705
    %714 = vst [vmem:[#allocation5 + $0x38] sm:$0xff] %v706
    // Predicated region
    $region30: #{tpu_custom_call.1} parent=1 // pred_check
      _
    $region31: #{tpu_custom_call.1} parent=1 // pred_check_branch
      %716 = sbr.rel (0) target = $region33
    $region32: #{tpu_custom_call.1} parent=1 // pred_region
      %718 = vsyncadd [#allocation4], 0
      %s719 = sshll.u32 [#allocation5], 4
      %s720 = int_to_ptr.vmem [resolvable:$true] %s719
      %s721 = sshll.u32 %s6, 4
      %s722 = int_to_ptr.hbm [resolvable:$true] %s721
      %727 = dma.vmem_to_hbm [thread:$0]  %s720, 1024, %s722, [#allocation4], 256, 256, 16
    $region33: #{tpu_custom_call.1} parent=1 // pred_fallthru
      _
    // Predicated region
    $region34: #{tpu_custom_call.1} parent=1 // pred_check
      _
    $region35: #{tpu_custom_call.1} parent=1 // pred_check_branch
      %729 = sbr.rel (0) target = $region37
    $region36: #{tpu_custom_call.1} parent=1 // pred_region
      %731 = dma.done [#allocation4], 1024
    $region37: #{tpu_custom_call.1} parent=1 // pred_fallthru
      _
    %732 = vsyncpa [#allocation3], 1
    %733 = vsyncpa [#allocation4], 1

</llo_original>
